<compile_context>
chip_gen: v5e
topology: v5e:2x2
jax: 0.10.0
libtpu: 0.0.40
codegen_flags: <defaults>
</compile_context>

<pallas_src>
import functools
import math

import jax
import jax.numpy as jnp
from jax.experimental import pallas as pl
from jax.experimental.pallas import tpu as pltpu


def _round_up(n, m):
    return ((n + m - 1) // m) * m


# --------------------------- fused attention kernel ---------------------------
def _gd_mha_kernel(x_ref, wq_ref, wk_ref, wv_ref, bq_ref, bk_ref, bv_ref,
                   wo_ref, bo_ref, bias_ref, bmul_ref, o_ref, *, scaling):
    H = wq_ref.shape[0]
    S = x_ref.shape[1]
    E = x_ref.shape[2]

    x = x_ref[0]                                            # [S, E]
    xb = jnp.broadcast_to(x[None, :, :], (H, S, E))         # [H, S, E]

    # in_proj, already split per head (q/k/v), all heads batched on the MXU.
    q = jnp.einsum('hse,hed->hsd', xb, wq_ref[...],
                   preferred_element_type=jnp.float32) + bq_ref[...]
    k = jnp.einsum('hse,hed->hsd', xb, wk_ref[...],
                   preferred_element_type=jnp.float32) + bk_ref[...]
    v = jnp.einsum('hse,hed->hsd', xb, wv_ref[...],
                   preferred_element_type=jnp.float32) + bv_ref[...]
    q = q * scaling

    # scores + (bias with key-padding -inf already folded in)
    s = jnp.einsum('hqd,hkd->hqk', q, k,
                   preferred_element_type=jnp.float32) + bias_ref[0]   # [H,S,S]

    # Softmax_1: exp(x - xmax) / (exp(-xmax) + sum exp(x - xmax))
    x_max = jnp.max(s, axis=-1, keepdims=True)
    e = jnp.exp(s - x_max)
    denom = jnp.exp(-x_max) + jnp.sum(e, axis=-1, keepdims=True)
    p = e * pl.reciprocal(denom, approx=True)

    # bias_mul already has masked keys zeroed in the wrapper
    p = p * bmul_ref[0]

    attn = jnp.einsum('hqk,hkd->hqd', p, v,
                      preferred_element_type=jnp.float32)              # [H,S,Dh]

    # out_proj with the head-merge folded into the weight layout:
    # out = sum_h attn[h] @ w_out[h]   (lane-dense, 128-wide padded columns)
    o_part = jnp.einsum('hsd,hdf->hsf', attn, wo_ref[...],
                        preferred_element_type=jnp.float32)            # [H,S,Eo]
    o_ref[0] = jnp.sum(o_part, axis=0) + bo_ref[...]


def gd_multihead_attention(params, x, attn_bias, attn_bias_mul,
                           key_padding_mask, *, num_heads):
    """x: [S, B, E]; attn_bias/attn_bias_mul: [B, H, S, S];
    key_padding_mask: [B, S] bool (True == pad).  Returns [S, B, E]."""
    S, B, E = x.shape
    H = num_heads
    Dh = E // H
    assert Dh * H == E
    scaling = Dh ** (-0.5)
    Eo = _round_up(E, 128)   # lane-dense output width

    w_in = params['w_in']        # [3E, E]  (PyTorch in_proj.weight layout)
    b_in = params['b_in']        # [3E]
    w_out = params['w_out']      # [E, E]   (PyTorch out_proj.weight layout)
    b_out = params['b_out']      # [E]

    # --- rearrange weights to per-head batched layout (matches the PyTorch
    #     view(seq, B*H, 3*Dh) packing: columns [h][q,k,v][d]) ---
    w_in_t = w_in.T.reshape(E, H, 3, Dh)                       # [E, H, 3, Dh]
    wq = jnp.transpose(w_in_t[:, :, 0, :], (1, 0, 2))          # [H, E, Dh]
    wk = jnp.transpose(w_in_t[:, :, 1, :], (1, 0, 2))
    wv = jnp.transpose(w_in_t[:, :, 2, :], (1, 0, 2))
    b3 = b_in.reshape(H, 3, Dh)
    bq = b3[:, 0, :][:, None, :]                               # [H, 1, Dh]
    bk = b3[:, 1, :][:, None, :]
    bv = b3[:, 2, :][:, None, :]

    wo = jnp.pad(w_out.T.reshape(H, Dh, E), ((0, 0), (0, 0), (0, Eo - E)))
    bo = jnp.pad(b_out, (0, Eo - E)).reshape(1, Eo)

    # --- fold key-padding mask into bias / bias_mul once (wrapper-side) ---
    kpm = key_padding_mask[:, None, None, :]                   # [B,1,1,S]
    bias_f = jnp.where(kpm, -jnp.inf, attn_bias).astype(jnp.float32)
    bmul_f = jnp.where(kpm, 0.0, attn_bias_mul).astype(jnp.float32)

    x_b = jnp.transpose(x, (1, 0, 2)).astype(jnp.float32)      # [B, S, E]

    out = pl.pallas_call(
        functools.partial(_gd_mha_kernel, scaling=scaling),
        out_shape=jax.ShapeDtypeStruct((B, S, Eo), jnp.float32),
        grid=(B,),
        in_specs=[
            pl.BlockSpec((1, S, E), lambda b: (b, 0, 0)),      # x
            pl.BlockSpec((H, E, Dh), lambda b: (0, 0, 0)),     # wq
            pl.BlockSpec((H, E, Dh), lambda b: (0, 0, 0)),     # wk
            pl.BlockSpec((H, E, Dh), lambda b: (0, 0, 0)),     # wv
            pl.BlockSpec((H, 1, Dh), lambda b: (0, 0, 0)),     # bq
            pl.BlockSpec((H, 1, Dh), lambda b: (0, 0, 0)),     # bk
            pl.BlockSpec((H, 1, Dh), lambda b: (0, 0, 0)),     # bv
            pl.BlockSpec((H, Dh, Eo), lambda b: (0, 0, 0)),    # w_out (padded)
            pl.BlockSpec((1, Eo), lambda b: (0, 0)),           # b_out (padded)
            pl.BlockSpec((1, H, S, S), lambda b: (b, 0, 0, 0)),  # bias (+mask)
            pl.BlockSpec((1, H, S, S), lambda b: (b, 0, 0, 0)),  # bias_mul
        ],
        out_specs=pl.BlockSpec((1, S, Eo), lambda b: (b, 0, 0)),
        compiler_params=pltpu.CompilerParams(
            dimension_semantics=("parallel",)),
    )(x_b, wq, wk, wv, bq, bk, bv, wo, bo, bias_f, bmul_f)

    return jnp.transpose(out[:, :, :E], (1, 0, 2))             # [S, B, E]


# ------------------------ pure-JAX reference (spec math) ----------------------
def gd_mha_reference(params, x, attn_bias, attn_bias_mul, key_padding_mask,
                     *, num_heads):
    S, B, E = x.shape
    H = num_heads
    Dh = E // H
    scaling = Dh ** (-0.5)

    qkv = x @ params['w_in'].T + params['b_in']                # [S, B, 3E]
    qkv = qkv.reshape(S, B * H, 3 * Dh).transpose(1, 0, 2)     # [B*H, S, 3Dh]
    q, k, v = qkv[..., :Dh], qkv[..., Dh:2 * Dh], qkv[..., 2 * Dh:]
    q = q * scaling
    s = jnp.einsum('bqd,bkd->bqk', q, k)                       # [B*H, S, S]
    s = s + attn_bias.reshape(B * H, S, S)
    # attn_dropout is identity (eval mode)
    kpm = key_padding_mask[:, None, None, :]
    s = jnp.where(jnp.broadcast_to(kpm, (B, H, S, S)).reshape(B * H, S, S),
                  -jnp.inf, s)
    bm = jnp.where(kpm, 0.0, attn_bias_mul).reshape(B * H, S, S)
    x_max = jnp.max(s, axis=-1, keepdims=True)
    e = jnp.exp(s - x_max)
    p = e / (jnp.exp(-x_max) + jnp.sum(e, axis=-1, keepdims=True))
    p = p * bm
    attn = jnp.einsum('bqk,bkd->bqd', p, v)                    # [B*H, S, Dh]
    attn = attn.transpose(1, 0, 2).reshape(S, B, E)
    return attn @ params['w_out'].T + params['b_out']


# -------------------------------- param init ----------------------------------
def init_params(key, *, embed_dim):
    E = embed_dim
    k1, k2, k3, k4 = jax.random.split(key, 4)

    def xavier(k, shape):
        fan_out, fan_in = shape
        bound = math.sqrt(6.0 / (fan_in + fan_out))
        return jax.random.uniform(k, shape, jnp.float32, -bound, bound)

    return dict(
        w_in=xavier(k1, (3 * E, E)),
        b_in=0.1 * jax.random.normal(k2, (3 * E,)).astype(jnp.float32),
        w_out=xavier(k3, (E, E)),
        b_out=0.1 * jax.random.normal(k4, (E,)).astype(jnp.float32),
    )


# ------------------------------------ main -------------------------------------
if __name__ == "__main__":
    S, B, E, H = 8, 2, 32, 4          # seq_len, batch, embed_dim, heads (Dh=8)

    root = jax.random.PRNGKey(0)
    kp, kx, kb, km = jax.random.split(root, 4)
    params = init_params(kp, embed_dim=E)

    x = jax.random.normal(kx, (S, B, E), jnp.float32)
    attn_bias = 0.5 * jax.random.normal(kb, (B, H, S, S), jnp.float32)
    attn_bias_mul = jax.random.uniform(km, (B, H, S, S), jnp.float32, 0.5, 1.5)
    # pad a couple of trailing keys per batch element (never all keys)
    key_padding_mask = (jnp.zeros((B, S), bool)
                        .at[0, -2:].set(True)
                        .at[1, -1:].set(True))

    fwd = jax.jit(functools.partial(gd_multihead_attention, num_heads=H))
    out = jax.block_until_ready(
        fwd(params, x, attn_bias, attn_bias_mul, key_padding_mask))
    assert out.shape == (S, B, E), out.shape

    ref = gd_mha_reference(params, x, attn_bias, attn_bias_mul,
                           key_padding_mask, num_heads=H)
    max_err = float(jnp.max(jnp.abs(out - ref)))
    assert max_err < 3e-2, f"max abs error vs reference: {max_err}"

    print("KERNEL_OK")
</pallas_src>

<mosaic_0001>
module attributes {stable_mosaic.version = 11 : i64} {
  func.func @_gd_mha_kernel(%arg0: i32, %arg1: memref<1x8x32xf32, #tpu.memory_space<vmem>>, %arg2: memref<4x32x8xf32, #tpu.memory_space<vmem>>, %arg3: memref<4x32x8xf32, #tpu.memory_space<vmem>>, %arg4: memref<4x32x8xf32, #tpu.memory_space<vmem>>, %arg5: memref<4x1x8xf32, #tpu.memory_space<vmem>>, %arg6: memref<4x1x8xf32, #tpu.memory_space<vmem>>, %arg7: memref<4x1x8xf32, #tpu.memory_space<vmem>>, %arg8: memref<4x8x128xf32, #tpu.memory_space<vmem>>, %arg9: memref<1x128xf32, #tpu.memory_space<vmem>>, %arg10: memref<1x4x8x8xf32, #tpu.memory_space<vmem>>, %arg11: memref<1x4x8x8xf32, #tpu.memory_space<vmem>>, %arg12: memref<1x8x128xf32, #tpu.memory_space<vmem>>) attributes {dimension_semantics = [#tpu.dimension_semantics<parallel>], iteration_bounds = array<i64: 2>, scalar_prefetch = 0 : i64, scratch_operands = 0 : i64, tpu.core_type = #tpu.core_type<tc>, window_params = [{transform_indices = @transform_0, window_bounds = array<i64: 1, 8, 32>}, {pipeline_mode = #tpu.pipeline_mode<synchronous>, transform_indices = @transform_1, window_bounds = array<i64: 4, 32, 8>}, {pipeline_mode = #tpu.pipeline_mode<synchronous>, transform_indices = @transform_2, window_bounds = array<i64: 4, 32, 8>}, {pipeline_mode = #tpu.pipeline_mode<synchronous>, transform_indices = @transform_3, window_bounds = array<i64: 4, 32, 8>}, {pipeline_mode = #tpu.pipeline_mode<synchronous>, transform_indices = @transform_4, window_bounds = array<i64: 4, 1, 8>}, {pipeline_mode = #tpu.pipeline_mode<synchronous>, transform_indices = @transform_5, window_bounds = array<i64: 4, 1, 8>}, {pipeline_mode = #tpu.pipeline_mode<synchronous>, transform_indices = @transform_6, window_bounds = array<i64: 4, 1, 8>}, {pipeline_mode = #tpu.pipeline_mode<synchronous>, transform_indices = @transform_7, window_bounds = array<i64: 4, 8, 128>}, {pipeline_mode = #tpu.pipeline_mode<synchronous>, transform_indices = @transform_8, window_bounds = array<i64: 1, 128>}, {transform_indices = @transform_9, window_bounds = array<i64: 1, 4, 8, 8>}, {transform_indices = @transform_10, window_bounds = array<i64: 1, 4, 8, 8>}, {transform_indices = @transform_11, window_bounds = array<i64: 1, 8, 128>}]} {
    %c0 = arith.constant 0 : index
    %c0_0 = arith.constant 0 : index
    %c0_1 = arith.constant 0 : index
    %0 = vector.load %arg1[%c0, %c0_0, %c0_1] : memref<1x8x32xf32, #tpu.memory_space<vmem>>, vector<1x8x32xf32>
    %1 = vector.shape_cast %0 : vector<1x8x32xf32> to vector<8x32xf32>
    %2 = vector.shape_cast %1 : vector<8x32xf32> to vector<1x8x32xf32>
    %3 = vector.shape_cast %2 : vector<1x8x32xf32> to vector<1x8x32xf32>
    %4 = vector.broadcast %3 : vector<1x8x32xf32> to vector<4x8x32xf32>
    %c0_2 = arith.constant 0 : index
    %c0_3 = arith.constant 0 : index
    %c0_4 = arith.constant 0 : index
    %5 = vector.load %arg2[%c0_2, %c0_3, %c0_4] : memref<4x32x8xf32, #tpu.memory_space<vmem>>, vector<4x32x8xf32>
    "tpu.trace_start"() <{level = 10 : i32, message = "hse,hed->hsd"}> : () -> ()
    %cst = arith.constant dense<0.000000e+00> : vector<4x8x8xf32>
    %6 = tpu.matmul %4, %5, %cst {dimension_numbers = #tpu.dot_dimension_numbers<[2], [1], [1], [2], [0, 0, 0, 1, 1, 2], [0], [0]>} : vector<4x8x32xf32>, vector<4x32x8xf32>, vector<4x8x8xf32> -> vector<4x8x8xf32>
    "tpu.trace_stop"() : () -> ()
    %c0_5 = arith.constant 0 : index
    %c0_6 = arith.constant 0 : index
    %c0_7 = arith.constant 0 : index
    %7 = vector.load %arg5[%c0_5, %c0_6, %c0_7] : memref<4x1x8xf32, #tpu.memory_space<vmem>>, vector<4x1x8xf32>
    %8 = vector.broadcast %7 : vector<4x1x8xf32> to vector<4x8x8xf32>
    %9 = arith.addf %6, %8 : vector<4x8x8xf32>
    %c0_8 = arith.constant 0 : index
    %c0_9 = arith.constant 0 : index
    %c0_10 = arith.constant 0 : index
    %10 = vector.load %arg3[%c0_8, %c0_9, %c0_10] : memref<4x32x8xf32, #tpu.memory_space<vmem>>, vector<4x32x8xf32>
    "tpu.trace_start"() <{level = 10 : i32, message = "hse,hed->hsd"}> : () -> ()
    %cst_11 = arith.constant dense<0.000000e+00> : vector<4x8x8xf32>
    %11 = tpu.matmul %4, %10, %cst_11 {dimension_numbers = #tpu.dot_dimension_numbers<[2], [1], [1], [2], [0, 0, 0, 1, 1, 2], [0], [0]>} : vector<4x8x32xf32>, vector<4x32x8xf32>, vector<4x8x8xf32> -> vector<4x8x8xf32>
    "tpu.trace_stop"() : () -> ()
    %c0_12 = arith.constant 0 : index
    %c0_13 = arith.constant 0 : index
    %c0_14 = arith.constant 0 : index
    %12 = vector.load %arg6[%c0_12, %c0_13, %c0_14] : memref<4x1x8xf32, #tpu.memory_space<vmem>>, vector<4x1x8xf32>
    %13 = vector.broadcast %12 : vector<4x1x8xf32> to vector<4x8x8xf32>
    %14 = arith.addf %11, %13 : vector<4x8x8xf32>
    %c0_15 = arith.constant 0 : index
    %c0_16 = arith.constant 0 : index
    %c0_17 = arith.constant 0 : index
    %15 = vector.load %arg4[%c0_15, %c0_16, %c0_17] : memref<4x32x8xf32, #tpu.memory_space<vmem>>, vector<4x32x8xf32>
    "tpu.trace_start"() <{level = 10 : i32, message = "hse,hed->hsd"}> : () -> ()
    %cst_18 = arith.constant dense<0.000000e+00> : vector<4x8x8xf32>
    %16 = tpu.matmul %4, %15, %cst_18 {dimension_numbers = #tpu.dot_dimension_numbers<[2], [1], [1], [2], [0, 0, 0, 1, 1, 2], [0], [0]>} : vector<4x8x32xf32>, vector<4x32x8xf32>, vector<4x8x8xf32> -> vector<4x8x8xf32>
    "tpu.trace_stop"() : () -> ()
    %c0_19 = arith.constant 0 : index
    %c0_20 = arith.constant 0 : index
    %c0_21 = arith.constant 0 : index
    %17 = vector.load %arg7[%c0_19, %c0_20, %c0_21] : memref<4x1x8xf32, #tpu.memory_space<vmem>>, vector<4x1x8xf32>
    %18 = vector.broadcast %17 : vector<4x1x8xf32> to vector<4x8x8xf32>
    %19 = arith.addf %16, %18 : vector<4x8x8xf32>
    %cst_22 = arith.constant 0.353553385 : f32
    %20 = vector.broadcast %cst_22 : f32 to vector<4x8x8xf32>
    %21 = arith.mulf %9, %20 : vector<4x8x8xf32>
    "tpu.trace_start"() <{level = 10 : i32, message = "hqd,hkd->hqk"}> : () -> ()
    %cst_23 = arith.constant dense<0.000000e+00> : vector<4x8x8xf32>
    %22 = tpu.matmul %21, %14, %cst_23 {dimension_numbers = #tpu.dot_dimension_numbers<[2], [2], [1], [1], [0, 0, 0, 1, 1, 1], [0], [0]>} : vector<4x8x8xf32>, vector<4x8x8xf32>, vector<4x8x8xf32> -> vector<4x8x8xf32>
    "tpu.trace_stop"() : () -> ()
    %c0_24 = arith.constant 0 : index
    %c0_25 = arith.constant 0 : index
    %c0_26 = arith.constant 0 : index
    %c0_27 = arith.constant 0 : index
    %23 = vector.load %arg10[%c0_24, %c0_25, %c0_26, %c0_27] : memref<1x4x8x8xf32, #tpu.memory_space<vmem>>, vector<1x4x8x8xf32>
    %24 = vector.shape_cast %23 : vector<1x4x8x8xf32> to vector<4x8x8xf32>
    %25 = arith.addf %22, %24 : vector<4x8x8xf32>
    %cst_28 = arith.constant dense<0xFF800000> : vector<4x8xf32>
    %26 = vector.multi_reduction <maximumf>, %25, %cst_28 [2] : vector<4x8x8xf32> to vector<4x8xf32>
    %27 = vector.shape_cast %26 : vector<4x8xf32> to vector<4x8x1xf32>
    %28 = vector.broadcast %27 : vector<4x8x1xf32> to vector<4x8x8xf32>
    %29 = arith.subf %25, %28 : vector<4x8x8xf32>
    %30 = math.exp %29 : vector<4x8x8xf32>
    %cst_29 = arith.constant 0.000000e+00 : f32
    %31 = vector.broadcast %cst_29 : f32 to vector<4x8x1xf32>
    %32 = arith.subf %31, %27 : vector<4x8x1xf32>
    %33 = math.exp %32 : vector<4x8x1xf32>
    %cst_30 = arith.constant dense<0.000000e+00> : vector<4x8xf32>
    %34 = vector.multi_reduction <add>, %30, %cst_30 [2] : vector<4x8x8xf32> to vector<4x8xf32>
    %35 = vector.shape_cast %34 : vector<4x8xf32> to vector<4x8x1xf32>
    %36 = arith.addf %33, %35 : vector<4x8x1xf32>
    %37 = tpu.reciprocal %36 {approx = true} : vector<4x8x1xf32> -> vector<4x8x1xf32>
    %38 = vector.broadcast %37 : vector<4x8x1xf32> to vector<4x8x8xf32>
    %39 = arith.mulf %30, %38 : vector<4x8x8xf32>
    %c0_31 = arith.constant 0 : index
    %c0_32 = arith.constant 0 : index
    %c0_33 = arith.constant 0 : index
    %c0_34 = arith.constant 0 : index
    %40 = vector.load %arg11[%c0_31, %c0_32, %c0_33, %c0_34] : memref<1x4x8x8xf32, #tpu.memory_space<vmem>>, vector<1x4x8x8xf32>
    %41 = vector.shape_cast %40 : vector<1x4x8x8xf32> to vector<4x8x8xf32>
    %42 = arith.mulf %39, %41 : vector<4x8x8xf32>
    "tpu.trace_start"() <{level = 10 : i32, message = "hqk,hkd->hqd"}> : () -> ()
    %cst_35 = arith.constant dense<0.000000e+00> : vector<4x8x8xf32>
    %43 = tpu.matmul %42, %19, %cst_35 {dimension_numbers = #tpu.dot_dimension_numbers<[2], [1], [1], [2], [0, 0, 0, 1, 1, 2], [0], [0]>} : vector<4x8x8xf32>, vector<4x8x8xf32>, vector<4x8x8xf32> -> vector<4x8x8xf32>
    "tpu.trace_stop"() : () -> ()
    %c0_36 = arith.constant 0 : index
    %c0_37 = arith.constant 0 : index
    %c0_38 = arith.constant 0 : index
    %44 = vector.load %arg8[%c0_36, %c0_37, %c0_38] : memref<4x8x128xf32, #tpu.memory_space<vmem>>, vector<4x8x128xf32>
    "tpu.trace_start"() <{level = 10 : i32, message = "hsd,hdf->hsf"}> : () -> ()
    %cst_39 = arith.constant dense<0.000000e+00> : vector<4x8x128xf32>
    %45 = tpu.matmul %43, %44, %cst_39 {dimension_numbers = #tpu.dot_dimension_numbers<[2], [1], [1], [2], [0, 0, 0, 1, 1, 2], [0], [0]>} : vector<4x8x8xf32>, vector<4x8x128xf32>, vector<4x8x128xf32> -> vector<4x8x128xf32>
    "tpu.trace_stop"() : () -> ()
    %cst_40 = arith.constant dense<0.000000e+00> : vector<8x128xf32>
    %46 = vector.multi_reduction <add>, %45, %cst_40 [0] : vector<4x8x128xf32> to vector<8x128xf32>
    %c0_41 = arith.constant 0 : index
    %c0_42 = arith.constant 0 : index
    %47 = vector.load %arg9[%c0_41, %c0_42] : memref<1x128xf32, #tpu.memory_space<vmem>>, vector<1x128xf32>
    %48 = vector.broadcast %47 : vector<1x128xf32> to vector<8x128xf32>
    %49 = arith.addf %46, %48 : vector<8x128xf32>
    %c0_43 = arith.constant 0 : index
    %c0_44 = arith.constant 0 : index
    %c0_45 = arith.constant 0 : index
    %50 = vector.load %arg12[%c0_43, %c0_44, %c0_45] : memref<1x8x128xf32, #tpu.memory_space<vmem>>, vector<1x8x128xf32>
    %51 = vector.shape_cast %50 : vector<1x8x128xf32> to vector<8x128xf32>
    %52 = vector.shape_cast %49 : vector<8x128xf32> to vector<1x8x128xf32>
    tpu.vector_store %arg12[%c0_43, %c0_44, %c0_45], %52 {strides = array<i32>} : memref<1x8x128xf32, #tpu.memory_space<vmem>>, vector<1x8x128xf32>,
    return
  }
  func.func @transform_0(%arg0: i32) -> (i32, i32, i32) {
    %c0_i32 = arith.constant 0 : i32
    %c0_i32_0 = arith.constant 0 : i32
    %c0_i32_1 = arith.constant 0 : i32
    return %arg0, %c0_i32, %c0_i32_0 : i32, i32, i32
  }
  func.func @transform_1(%arg0: i32) -> (i32, i32, i32) {
    %c0_i32 = arith.constant 0 : i32
    %c0_i32_0 = arith.constant 0 : i32
    %c0_i32_1 = arith.constant 0 : i32
    %c0_i32_2 = arith.constant 0 : i32
    return %c0_i32, %c0_i32_0, %c0_i32_1 : i32, i32, i32
  }
  func.func @transform_2(%arg0: i32) -> (i32, i32, i32) {
    %c0_i32 = arith.constant 0 : i32
    %c0_i32_0 = arith.constant 0 : i32
    %c0_i32_1 = arith.constant 0 : i32
    %c0_i32_2 = arith.constant 0 : i32
    return %c0_i32, %c0_i32_0, %c0_i32_1 : i32, i32, i32
  }
  func.func @transform_3(%arg0: i32) -> (i32, i32, i32) {
    %c0_i32 = arith.constant 0 : i32
    %c0_i32_0 = arith.constant 0 : i32
    %c0_i32_1 = arith.constant 0 : i32
    %c0_i32_2 = arith.constant 0 : i32
    return %c0_i32, %c0_i32_0, %c0_i32_1 : i32, i32, i32
  }
  func.func @transform_4(%arg0: i32) -> (i32, i32, i32) {
    %c0_i32 = arith.constant 0 : i32
    %c0_i32_0 = arith.constant 0 : i32
    %c0_i32_1 = arith.constant 0 : i32
    %c0_i32_2 = arith.constant 0 : i32
    return %c0_i32, %c0_i32_0, %c0_i32_1 : i32, i32, i32
  }
  func.func @transform_5(%arg0: i32) -> (i32, i32, i32) {
    %c0_i32 = arith.constant 0 : i32
    %c0_i32_0 = arith.constant 0 : i32
    %c0_i32_1 = arith.constant 0 : i32
    %c0_i32_2 = arith.constant 0 : i32
    return %c0_i32, %c0_i32_0, %c0_i32_1 : i32, i32, i32
  }
  func.func @transform_6(%arg0: i32) -> (i32, i32, i32) {
    %c0_i32 = arith.constant 0 : i32
    %c0_i32_0 = arith.constant 0 : i32
    %c0_i32_1 = arith.constant 0 : i32
    %c0_i32_2 = arith.constant 0 : i32
    return %c0_i32, %c0_i32_0, %c0_i32_1 : i32, i32, i32
  }
  func.func @transform_7(%arg0: i32) -> (i32, i32, i32) {
    %c0_i32 = arith.constant 0 : i32
    %c0_i32_0 = arith.constant 0 : i32
    %c0_i32_1 = arith.constant 0 : i32
    %c0_i32_2 = arith.constant 0 : i32
    return %c0_i32, %c0_i32_0, %c0_i32_1 : i32, i32, i32
  }
  func.func @transform_8(%arg0: i32) -> (i32, i32) {
    %c0_i32 = arith.constant 0 : i32
    %c0_i32_0 = arith.constant 0 : i32
    %c0_i32_1 = arith.constant 0 : i32
    return %c0_i32, %c0_i32_0 : i32, i32
  }
  func.func @transform_9(%arg0: i32) -> (i32, i32, i32, i32) {
    %c0_i32 = arith.constant 0 : i32
    %c0_i32_0 = arith.constant 0 : i32
    %c0_i32_1 = arith.constant 0 : i32
    %c0_i32_2 = arith.constant 0 : i32
    return %arg0, %c0_i32, %c0_i32_0, %c0_i32_1 : i32, i32, i32, i32
  }
  func.func @transform_10(%arg0: i32) -> (i32, i32, i32, i32) {
    %c0_i32 = arith.constant 0 : i32
    %c0_i32_0 = arith.constant 0 : i32
    %c0_i32_1 = arith.constant 0 : i32
    %c0_i32_2 = arith.constant 0 : i32
    return %arg0, %c0_i32, %c0_i32_0, %c0_i32_1 : i32, i32, i32, i32
  }
  func.func @transform_11(%arg0: i32) -> (i32, i32, i32) {
    %c0_i32 = arith.constant 0 : i32
    %c0_i32_0 = arith.constant 0 : i32
    %c0_i32_1 = arith.constant 0 : i32
    return %arg0, %c0_i32, %c0_i32_0 : i32, i32, i32
  }
}

</mosaic_0001>

<llo_original>
// kernel: gd_multihead_attention.1
$region0: #{gd_multihead_attention.1}
  #allocation0 [shape = 'u32[]', space=smem, size = 0x4, offset = 0x4, fixed_abs, tag = 'smem constant byte address 0x4 - core index']
  #allocation1 [shape = 'u32[72,128]{1,0:T(1,128)}', space=vmem, size = 0x9000, scoped, tag = 'internal scratch']
  %s0 = inlined_call_operand.vmem [shape: f32[2,8,32], index: 0, kind: input, shape index: {}]
  %s1 = inlined_call_operand.vmem [shape: f32[4,32,8], index: 1, kind: input, shape index: {}]
  %s2 = inlined_call_operand.vmem [shape: f32[4,32,8], index: 2, kind: input, shape index: {}]
  %s3 = inlined_call_operand.vmem [shape: f32[4,32,8], index: 3, kind: input, shape index: {}]
  %s4 = inlined_call_operand.vmem [shape: f32[4,1,8], index: 4, kind: input, shape index: {}]
  %s5 = inlined_call_operand.vmem [shape: f32[4,1,8], index: 5, kind: input, shape index: {}]
  %s6 = inlined_call_operand.vmem [shape: f32[4,1,8], index: 6, kind: input, shape index: {}]
  %s7 = inlined_call_operand.vmem [shape: f32[4,8,128], index: 7, kind: input, shape index: {}]
  %s8 = inlined_call_operand.vmem [shape: f32[1,128], index: 8, kind: input, shape index: {}]
  %s9 = inlined_call_operand.vmem [shape: f32[2,4,8,8], index: 9, kind: input, shape index: {}]
  %s10 = inlined_call_operand.vmem [shape: f32[2,4,8,8], index: 10, kind: input, shape index: {}]
  %s11 = inlined_call_operand.vmem [shape: f32[2,8,128], index: 11, kind: output, shape index: {}]
  %s12 = sld [smem:[#allocation0]]
  $region77: #{gd_multihead_attention.1} parent=0
    _
  %s14 = ssub.s32 1, %s12
  %s15 = scalar_select 0, %s14, %s12
  loop: start=0, step=1, limit=4
  $region2: #{gd_multihead_attention.1} parent=0 // loop_pre_header
    _
  $region3: #{gd_multihead_attention.1} parent=0 // loop_header
    %s17 = sphi 0, %s21
    %p18 = scmp.ge.s32.totalorder %s17, 4
    %s27 = sphi 0, %s29
    %s30 = sphi 0, %s27
    %s31 = sphi 0, %s30
    %s47 = sphi 0, %s31
    %s51 = sphi 0, %s51
    %s53 = sphi 0, %s51
    %s54 = sphi 0, %s53
    %s68 = sphi 0, %s54
    %s72 = sphi 0, %s72
    %s74 = sphi 0, %s72
    %s75 = sphi 0, %s74
    %s89 = sphi 0, %s75
    %s93 = sphi 0, %s93
    %s95 = sphi 0, %s93
    %s96 = sphi 0, %s95
    %s110 = sphi 0, %s96
    %s114 = sphi 0, %s114
    %s116 = sphi 0, %s114
    %s117 = sphi 0, %s116
    %s131 = sphi 0, %s117
    %s135 = sphi 0, %s135
    %s137 = sphi 0, %s135
    %s138 = sphi 0, %s137
    %s152 = sphi 0, %s138
    %s156 = sphi 0, %s156
    %s158 = sphi 0, %s156
    %s159 = sphi 0, %s158
    %s173 = sphi 0, %s159
    %s177 = sphi 0, %s177
    %s179 = sphi 0, %s177
    %s180 = sphi 0, %s179
    %s194 = sphi 0, %s180
    %s198 = sphi 0, %s198
    %s200 = sphi 0, %s198
    %s201 = sphi 0, %s200
    %s215 = sphi 0, %s201
    %s221 = sphi 0, %s223
    %s224 = sphi 0, %s221
    %s225 = sphi 0, %s224
    %s241 = sphi 0, %s225
    %s247 = sphi 0, %s249
    %s250 = sphi 0, %s247
    %s251 = sphi 0, %s250
    %s267 = sphi 0, %s251
    %s273 = sphi 0, %s275
    %s276 = sphi 0, %s273
    %s277 = sphi 0, %s276
    %s293 = sphi 0, %s277
  $region4: #{gd_multihead_attention.1} parent=0 // loop_header_branch
    %20 = sbr.rel (%p18) target = $region8
  $region5: #{gd_multihead_attention.1} parent=0 // loop_body
    %s22 = ssub.s32 %s17, 1
    %s23 = ssub.s32 %s17, 2
    %s24 = sadd.s32 %s17, 1
    %s25 = ssub.s32 %s17, %s24
    %p26 = scmp.eq.s32.totalorder %s25, 0
    %s28 = sadd.s32 %s27, 1
    %s29 = scalar_select %p26, %s27, %s28
    %p32 = pneg %p26
    %p33 = scmp.eq.s32.totalorder %s17, 1
    %p34 = por %p32, %p33
    %p35 = scmp.ne.s32.totalorder %s27, %s30
    %p36 = scmp.eq.s32.totalorder %s17, 0
    %p37 = por %p35, %p36
    %p38 = scmp.ne.s32.totalorder %s27, %s30
    %p39 = scmp.eq.s32.totalorder %s22, 1
    %p40 = por %p38, %p39
    %p41 = scmp.ne.s32.totalorder %s30, %s31
    %p42 = scmp.eq.s32.totalorder %s22, 0
    %p43 = por %p41, %p42
    %p44 = scmp.ne.s32.totalorder %s30, %s31
    %p45 = scmp.eq.s32.totalorder %s23, 1
    %p46 = por %p44, %p45
    %p48 = scmp.ne.s32.totalorder %s31, %s47
    %p49 = scmp.eq.s32.totalorder %s23, 0
    %p50 = por %p48, %p49
    %s52 = sadd.s32 %s51, 1
    %p55 = scmp.eq.s32.totalorder %s17, 1
    %p56 = scmp.ne.s32.totalorder %s51, %s53
    %p57 = scmp.eq.s32.totalorder %s17, 0
    %p58 = por %p56, %p57
    %p59 = scmp.ne.s32.totalorder %s51, %s53
    %p60 = scmp.eq.s32.totalorder %s22, 1
    %p61 = por %p59, %p60
    %p62 = scmp.ne.s32.totalorder %s53, %s54
    %p63 = scmp.eq.s32.totalorder %s22, 0
    %p64 = por %p62, %p63
    %p65 = scmp.ne.s32.totalorder %s53, %s54
    %p66 = scmp.eq.s32.totalorder %s23, 1
    %p67 = por %p65, %p66
    %p69 = scmp.ne.s32.totalorder %s54, %s68
    %p70 = scmp.eq.s32.totalorder %s23, 0
    %p71 = por %p69, %p70
    %s73 = sadd.s32 %s72, 1
    %p76 = scmp.eq.s32.totalorder %s17, 1
    %p77 = scmp.ne.s32.totalorder %s72, %s74
    %p78 = scmp.eq.s32.totalorder %s17, 0
    %p79 = por %p77, %p78
    %p80 = scmp.ne.s32.totalorder %s72, %s74
    %p81 = scmp.eq.s32.totalorder %s22, 1
    %p82 = por %p80, %p81
    %p83 = scmp.ne.s32.totalorder %s74, %s75
    %p84 = scmp.eq.s32.totalorder %s22, 0
    %p85 = por %p83, %p84
    %p86 = scmp.ne.s32.totalorder %s74, %s75
    %p87 = scmp.eq.s32.totalorder %s23, 1
    %p88 = por %p86, %p87
    %p90 = scmp.ne.s32.totalorder %s75, %s89
    %p91 = scmp.eq.s32.totalorder %s23, 0
    %p92 = por %p90, %p91
    %s94 = sadd.s32 %s93, 1
    %p97 = scmp.eq.s32.totalorder %s17, 1
    %p98 = scmp.ne.s32.totalorder %s93, %s95
    %p99 = scmp.eq.s32.totalorder %s17, 0
    %p100 = por %p98, %p99
    %p101 = scmp.ne.s32.totalorder %s93, %s95
    %p102 = scmp.eq.s32.totalorder %s22, 1
    %p103 = por %p101, %p102
    %p104 = scmp.ne.s32.totalorder %s95, %s96
    %p105 = scmp.eq.s32.totalorder %s22, 0
    %p106 = por %p104, %p105
    %p107 = scmp.ne.s32.totalorder %s95, %s96
    %p108 = scmp.eq.s32.totalorder %s23, 1
    %p109 = por %p107, %p108
    %p111 = scmp.ne.s32.totalorder %s96, %s110
    %p112 = scmp.eq.s32.totalorder %s23, 0
    %p113 = por %p111, %p112
    %s115 = sadd.s32 %s114, 1
    %p118 = scmp.eq.s32.totalorder %s17, 1
    %p119 = scmp.ne.s32.totalorder %s114, %s116
    %p120 = scmp.eq.s32.totalorder %s17, 0
    %p121 = por %p119, %p120
    %p122 = scmp.ne.s32.totalorder %s114, %s116
    %p123 = scmp.eq.s32.totalorder %s22, 1
    %p124 = por %p122, %p123
    %p125 = scmp.ne.s32.totalorder %s116, %s117
    %p126 = scmp.eq.s32.totalorder %s22, 0
    %p127 = por %p125, %p126
    %p128 = scmp.ne.s32.totalorder %s116, %s117
    %p129 = scmp.eq.s32.totalorder %s23, 1
    %p130 = por %p128, %p129
    %p132 = scmp.ne.s32.totalorder %s117, %s131
    %p133 = scmp.eq.s32.totalorder %s23, 0
    %p134 = por %p132, %p133
    %s136 = sadd.s32 %s135, 1
    %p139 = scmp.eq.s32.totalorder %s17, 1
    %p140 = scmp.ne.s32.totalorder %s135, %s137
    %p141 = scmp.eq.s32.totalorder %s17, 0
    %p142 = por %p140, %p141
    %p143 = scmp.ne.s32.totalorder %s135, %s137
    %p144 = scmp.eq.s32.totalorder %s22, 1
    %p145 = por %p143, %p144
    %p146 = scmp.ne.s32.totalorder %s137, %s138
    %p147 = scmp.eq.s32.totalorder %s22, 0
    %p148 = por %p146, %p147
    %p149 = scmp.ne.s32.totalorder %s137, %s138
    %p150 = scmp.eq.s32.totalorder %s23, 1
    %p151 = por %p149, %p150
    %p153 = scmp.ne.s32.totalorder %s138, %s152
    %p154 = scmp.eq.s32.totalorder %s23, 0
    %p155 = por %p153, %p154
    %s157 = sadd.s32 %s156, 1
    %p160 = scmp.eq.s32.totalorder %s17, 1
    %p161 = scmp.ne.s32.totalorder %s156, %s158
    %p162 = scmp.eq.s32.totalorder %s17, 0
    %p163 = por %p161, %p162
    %p164 = scmp.ne.s32.totalorder %s156, %s158
    %p165 = scmp.eq.s32.totalorder %s22, 1
    %p166 = por %p164, %p165
    %p167 = scmp.ne.s32.totalorder %s158, %s159
    %p168 = scmp.eq.s32.totalorder %s22, 0
    %p169 = por %p167, %p168
    %p170 = scmp.ne.s32.totalorder %s158, %s159
    %p171 = scmp.eq.s32.totalorder %s23, 1
    %p172 = por %p170, %p171
    %p174 = scmp.ne.s32.totalorder %s159, %s173
    %p175 = scmp.eq.s32.totalorder %s23, 0
    %p176 = por %p174, %p175
    %s178 = sadd.s32 %s177, 1
    %p181 = scmp.eq.s32.totalorder %s17, 1
    %p182 = scmp.ne.s32.totalorder %s177, %s179
    %p183 = scmp.eq.s32.totalorder %s17, 0
    %p184 = por %p182, %p183
    %p185 = scmp.ne.s32.totalorder %s177, %s179
    %p186 = scmp.eq.s32.totalorder %s22, 1
    %p187 = por %p185, %p186
    %p188 = scmp.ne.s32.totalorder %s179, %s180
    %p189 = scmp.eq.s32.totalorder %s22, 0
    %p190 = por %p188, %p189
    %p191 = scmp.ne.s32.totalorder %s179, %s180
    %p192 = scmp.eq.s32.totalorder %s23, 1
    %p193 = por %p191, %p192
    %p195 = scmp.ne.s32.totalorder %s180, %s194
    %p196 = scmp.eq.s32.totalorder %s23, 0
    %p197 = por %p195, %p196
    %s199 = sadd.s32 %s198, 1
    %p202 = scmp.eq.s32.totalorder %s17, 1
    %p203 = scmp.ne.s32.totalorder %s198, %s200
    %p204 = scmp.eq.s32.totalorder %s17, 0
    %p205 = por %p203, %p204
    %p206 = scmp.ne.s32.totalorder %s198, %s200
    %p207 = scmp.eq.s32.totalorder %s22, 1
    %p208 = por %p206, %p207
    %p209 = scmp.ne.s32.totalorder %s200, %s201
    %p210 = scmp.eq.s32.totalorder %s22, 0
    %p211 = por %p209, %p210
    %p212 = scmp.ne.s32.totalorder %s200, %s201
    %p213 = scmp.eq.s32.totalorder %s23, 1
    %p214 = por %p212, %p213
    %p216 = scmp.ne.s32.totalorder %s201, %s215
    %p217 = scmp.eq.s32.totalorder %s23, 0
    %p218 = por %p216, %p217
    %s219 = ssub.s32 %s17, %s24
    %p220 = scmp.eq.s32.totalorder %s219, 0
    %s222 = sadd.s32 %s221, 1
    %s223 = scalar_select %p220, %s221, %s222
    %p226 = pneg %p220
    %p227 = scmp.eq.s32.totalorder %s17, 1
    %p228 = por %p226, %p227
    %p229 = scmp.ne.s32.totalorder %s221, %s224
    %p230 = scmp.eq.s32.totalorder %s17, 0
    %p231 = por %p229, %p230
    %p232 = scmp.ne.s32.totalorder %s221, %s224
    %p233 = scmp.eq.s32.totalorder %s22, 1
    %p234 = por %p232, %p233
    %p235 = scmp.ne.s32.totalorder %s224, %s225
    %p236 = scmp.eq.s32.totalorder %s22, 0
    %p237 = por %p235, %p236
    %p238 = scmp.ne.s32.totalorder %s224, %s225
    %p239 = scmp.eq.s32.totalorder %s23, 1
    %p240 = por %p238, %p239
    %p242 = scmp.ne.s32.totalorder %s225, %s241
    %p243 = scmp.eq.s32.totalorder %s23, 0
    %p244 = por %p242, %p243
    %s245 = ssub.s32 %s17, %s24
    %p246 = scmp.eq.s32.totalorder %s245, 0
    %s248 = sadd.s32 %s247, 1
    %s249 = scalar_select %p246, %s247, %s248
    %p252 = pneg %p246
    %p253 = scmp.eq.s32.totalorder %s17, 1
    %p254 = por %p252, %p253
    %p255 = scmp.ne.s32.totalorder %s247, %s250
    %p256 = scmp.eq.s32.totalorder %s17, 0
    %p257 = por %p255, %p256
    %p258 = scmp.ne.s32.totalorder %s247, %s250
    %p259 = scmp.eq.s32.totalorder %s22, 1
    %p260 = por %p258, %p259
    %p261 = scmp.ne.s32.totalorder %s250, %s251
    %p262 = scmp.eq.s32.totalorder %s22, 0
    %p263 = por %p261, %p262
    %p264 = scmp.ne.s32.totalorder %s250, %s251
    %p265 = scmp.eq.s32.totalorder %s23, 1
    %p266 = por %p264, %p265
    %p268 = scmp.ne.s32.totalorder %s251, %s267
    %p269 = scmp.eq.s32.totalorder %s23, 0
    %p270 = por %p268, %p269
    %s271 = ssub.s32 %s17, %s24
    %p272 = scmp.eq.s32.totalorder %s271, 0
    %s274 = sadd.s32 %s273, 1
    %s275 = scalar_select %p272, %s273, %s274
    %p278 = pneg %p272
    %p279 = scmp.eq.s32.totalorder %s17, 1
    %p280 = por %p278, %p279
    %p281 = scmp.ne.s32.totalorder %s273, %s276
    %p282 = scmp.eq.s32.totalorder %s17, 0
    %p283 = por %p281, %p282
    %p284 = scmp.ne.s32.totalorder %s273, %s276
    %p285 = scmp.eq.s32.totalorder %s22, 1
    %p286 = por %p284, %p285
    %p287 = scmp.ne.s32.totalorder %s276, %s277
    %p288 = scmp.eq.s32.totalorder %s22, 0
    %p289 = por %p287, %p288
    %p290 = scmp.ne.s32.totalorder %s276, %s277
    %p291 = scmp.eq.s32.totalorder %s23, 1
    %p292 = por %p290, %p291
    %p294 = scmp.ne.s32.totalorder %s277, %s293
    %p295 = scmp.eq.s32.totalorder %s23, 0
    %p296 = por %p294, %p295
    %p297 = scmp.le.s32.totalorder 1, %s17
    %p298 = scmp.lt.s32.totalorder %s17, 3
    %p299 = pnand %p297, %p298
    %p300 = pneg %p299
    // Predicated region
    $region9: #{gd_multihead_attention.1} parent=5 // pred_check
      _
    $region10: #{gd_multihead_attention.1} parent=5 // pred_check_branch
      %302 = sbr.rel (%p299) target = $region12
    $region11: #{gd_multihead_attention.1} parent=5 // pred_region
      %s303 = ssub.s32 %s17, 1
      // Predicated region
      $region13: #{gd_multihead_attention.1} parent=11 // pred_check
        %p304 = pneg %p64
      $region14: #{gd_multihead_attention.1} parent=11 // pred_check_branch
        %306 = sbr.rel (%p304) target = $region16
      $region15: #{gd_multihead_attention.1} parent=11 // pred_region
        _
      $region16: #{gd_multihead_attention.1} parent=11 // pred_fallthru
        _
      // Predicated region
      $region17: #{gd_multihead_attention.1} parent=11 // pred_check
        %p307 = pneg %p85
      $region18: #{gd_multihead_attention.1} parent=11 // pred_check_branch
        %309 = sbr.rel (%p307) target = $region20
      $region19: #{gd_multihead_attention.1} parent=11 // pred_region
        _
      $region20: #{gd_multihead_attention.1} parent=11 // pred_fallthru
        _
      // Predicated region
      $region21: #{gd_multihead_attention.1} parent=11 // pred_check
        %p310 = pneg %p106
      $region22: #{gd_multihead_attention.1} parent=11 // pred_check_branch
        %312 = sbr.rel (%p310) target = $region24
      $region23: #{gd_multihead_attention.1} parent=11 // pred_region
        _
      $region24: #{gd_multihead_attention.1} parent=11 // pred_fallthru
        _
      // Predicated region
      $region25: #{gd_multihead_attention.1} parent=11 // pred_check
        %p313 = pneg %p127
      $region26: #{gd_multihead_attention.1} parent=11 // pred_check_branch
        %315 = sbr.rel (%p313) target = $region28
      $region27: #{gd_multihead_attention.1} parent=11 // pred_region
        _
      $region28: #{gd_multihead_attention.1} parent=11 // pred_fallthru
        _
      // Predicated region
      $region29: #{gd_multihead_attention.1} parent=11 // pred_check
        %p316 = pneg %p148
      $region30: #{gd_multihead_attention.1} parent=11 // pred_check_branch
        %318 = sbr.rel (%p316) target = $region32
      $region31: #{gd_multihead_attention.1} parent=11 // pred_region
        _
      $region32: #{gd_multihead_attention.1} parent=11 // pred_fallthru
        _
      // Predicated region
      $region33: #{gd_multihead_attention.1} parent=11 // pred_check
        %p319 = pneg %p169
      $region34: #{gd_multihead_attention.1} parent=11 // pred_check_branch
        %321 = sbr.rel (%p319) target = $region36
      $region35: #{gd_multihead_attention.1} parent=11 // pred_region
        _
      $region36: #{gd_multihead_attention.1} parent=11 // pred_fallthru
        _
      // Predicated region
      $region37: #{gd_multihead_attention.1} parent=11 // pred_check
        %p322 = pneg %p190
      $region38: #{gd_multihead_attention.1} parent=11 // pred_check_branch
        %324 = sbr.rel (%p322) target = $region40
      $region39: #{gd_multihead_attention.1} parent=11 // pred_region
        _
      $region40: #{gd_multihead_attention.1} parent=11 // pred_fallthru
        _
      // Predicated region
      $region41: #{gd_multihead_attention.1} parent=11 // pred_check
        %p325 = pneg %p211
      $region42: #{gd_multihead_attention.1} parent=11 // pred_check_branch
        %327 = sbr.rel (%p325) target = $region44
      $region43: #{gd_multihead_attention.1} parent=11 // pred_region
        _
      $region44: #{gd_multihead_attention.1} parent=11 // pred_fallthru
        _
    $region12: #{gd_multihead_attention.1} parent=5 // pred_fallthru
      _
    %p328 = scmp.lt.s32.totalorder %s17, 2
    // Predicated region
    $region45: #{gd_multihead_attention.1} parent=5 // pred_check
      %p329 = pneg %p328
    $region46: #{gd_multihead_attention.1} parent=5 // pred_check_branch
      %331 = sbr.rel (%p329) target = $region48
    $region47: #{gd_multihead_attention.1} parent=5 // pred_region
      // Predicated region
      $region49: #{gd_multihead_attention.1} parent=47 // pred_check
        %p332 = pneg %p37
      $region50: #{gd_multihead_attention.1} parent=47 // pred_check_branch
        %334 = sbr.rel (%p332) target = $region52
      $region51: #{gd_multihead_attention.1} parent=47 // pred_region
        %p335 = scmp.lt.s32.totalorder %s17, 1
        %s336 = scalar_select %p335, %s17, 1
        %s337 = smul.addr %s336, 8
        %s338 = scalar_lea.vmem %s0, %s337
      $region52: #{gd_multihead_attention.1} parent=47 // pred_fallthru
        _
      // Predicated region
      $region53: #{gd_multihead_attention.1} parent=47 // pred_check
        %p339 = pneg %p231
      $region54: #{gd_multihead_attention.1} parent=47 // pred_check_branch
        %341 = sbr.rel (%p339) target = $region56
      $region55: #{gd_multihead_attention.1} parent=47 // pred_region
        %p342 = scmp.lt.s32.totalorder %s17, 1
        %s343 = scalar_select %p342, %s17, 1
        %s344 = smul.addr %s343, 4
        %s345 = smul.addr %s344, 8
        %s346 = scalar_lea.vmem %s9, %s345
      $region56: #{gd_multihead_attention.1} parent=47 // pred_fallthru
        _
      // Predicated region
      $region57: #{gd_multihead_attention.1} parent=47 // pred_check
        %p347 = pneg %p257
      $region58: #{gd_multihead_attention.1} parent=47 // pred_check_branch
        %349 = sbr.rel (%p347) target = $region60
      $region59: #{gd_multihead_attention.1} parent=47 // pred_region
        %p350 = scmp.lt.s32.totalorder %s17, 1
        %s351 = scalar_select %p350, %s17, 1
        %s352 = smul.addr %s351, 4
        %s353 = smul.addr %s352, 8
        %s354 = scalar_lea.vmem %s10, %s353
      $region60: #{gd_multihead_attention.1} parent=47 // pred_fallthru
        _
    $region48: #{gd_multihead_attention.1} parent=5 // pred_fallthru
      _
    %p355 = scmp.le.s32.totalorder 1, %s17
    %p356 = scmp.lt.s32.totalorder %s17, 3
    %p357 = pnand %p355, %p356
    %p358 = pneg %p357
    // Predicated region
    $region61: #{gd_multihead_attention.1} parent=5 // pred_check
      _
    $region62: #{gd_multihead_attention.1} parent=5 // pred_check_branch
      %360 = sbr.rel (%p357) target = $region64
    $region63: #{gd_multihead_attention.1} parent=5 // pred_region
      %s361 = ssub.s32 %s17, 1
      %p362 = scmp.lt.s32.totalorder %s22, 1
      %s363 = scalar_select %p362, %s22, 1
      %s364 = smul.addr %s363, 8
      %s365 = scalar_lea.vmem %s0, %s364
      %p366 = pneg %p43
      %p367 = pneg %p40
      %p368 = pneg %p64
      %p369 = pneg %p61
      %p370 = pneg %p85
      %p371 = pneg %p82
      %p372 = pneg %p106
      %p373 = pneg %p103
      %p374 = pneg %p127
      %p375 = pneg %p124
      %p376 = pneg %p148
      %p377 = pneg %p145
      %p378 = pneg %p169
      %p379 = pneg %p166
      %p380 = pneg %p190
      %p381 = pneg %p187
      %p382 = pneg %p211
      %p383 = pneg %p208
      %p384 = scmp.lt.s32.totalorder %s22, 1
      %s385 = scalar_select %p384, %s22, 1
      %s386 = smul.addr %s385, 4
      %s387 = smul.addr %s386, 8
      %s388 = scalar_lea.vmem %s9, %s387
      %p389 = pneg %p237
      %p390 = pneg %p234
      %p391 = scmp.lt.s32.totalorder %s22, 1
      %s392 = scalar_select %p391, %s22, 1
      %s393 = smul.addr %s392, 4
      %s394 = smul.addr %s393, 8
      %s395 = scalar_lea.vmem %s10, %s394
      %p396 = pneg %p263
      %p397 = pneg %p260
      %p398 = pneg %p289
      %p399 = pneg %p286
      %p400 = scmp.lt.s32.totalorder %s22, 1
      %s401 = scalar_select %p400, %s22, 1
      %s402 = smul.addr %s401, 8
      %s403 = scalar_lea.vmem %s11, %s402
      %p404 = scmp.lt.s32.totalorder %s22, 1
      %s405 = scalar_select %p404, %s22, 1
      %s406 = smul.addr %s405, 8
      %s407 = scalar_lea.vmem %s0, %s406
      %p408 = scmp.lt.s32.totalorder %s22, 1
      %s409 = scalar_select %p408, %s22, 1
      %s410 = smul.addr %s409, 4
      %s411 = smul.addr %s410, 8
      %s412 = scalar_lea.vmem %s9, %s411
      %p413 = scmp.lt.s32.totalorder %s22, 1
      %s414 = scalar_select %p413, %s22, 1
      %s415 = smul.addr %s414, 4
      %s416 = smul.addr %s415, 8
      %s417 = scalar_lea.vmem %s10, %s416
      %p418 = scmp.lt.s32.totalorder %s22, 1
      %s419 = scalar_select %p418, %s22, 1
      %s420 = smul.addr %s419, 8
      %s421 = scalar_lea.vmem %s11, %s420
      %v422 = vld [vmem:[%s407] sm:$0xff]
      %v423 = vld [vmem:[%s1] sm:$0xff]
      %v424 = vld [vmem:[%s1 + $0x8] sm:$0xff]
      %v425 = vld [vmem:[%s1 + $0x10] sm:$0xff]
      %v426 = vld [vmem:[%s1 + $0x18] sm:$0xff]
      %v427 = vld [vmem:[%s1 + $0x20] sm:$0xff]
      %v428 = vld [vmem:[%s1 + $0x28] sm:$0xff]
      %v429 = vld [vmem:[%s1 + $0x30] sm:$0xff]
      %v430 = vld [vmem:[%s1 + $0x38] sm:$0xff]
      %v431 = vld [vmem:[%s1 + $0x40] sm:$0xff]
      %v432 = vld [vmem:[%s1 + $0x48] sm:$0xff]
      %v433 = vld [vmem:[%s1 + $0x50] sm:$0xff]
      %v434 = vld [vmem:[%s1 + $0x58] sm:$0xff]
      %v435 = vld [vmem:[%s1 + $0x60] sm:$0xff]
      %v436 = vld [vmem:[%s1 + $0x68] sm:$0xff]
      %v437 = vld [vmem:[%s1 + $0x70] sm:$0xff]
      %v438 = vld [vmem:[%s1 + $0x78] sm:$0xff]
      %v439 = vld [vmem:[%s4] sm:$0x1]
      %v440 = vld [vmem:[%s4 + $0x1] sm:$0x1]
      %v441 = vld [vmem:[%s4 + $0x2] sm:$0x1]
      %v442 = vld [vmem:[%s4 + $0x3] sm:$0x1]
      %v447 = vperm.slane %v439, 0
      %v448 = vperm.slane %v440, 0
      %v449 = vperm.slane %v441, 0
      %v450 = vperm.slane %v442, 0
      %vm455 = vcmask 261120
      %v457 = vsel %vm455, %v422, 0
      %459 = vmatpush.msra.mxu0 0.0
      %460 = vmatpush.msra.mxu0 0.0
      %461 = vmatpush.msra.mxu0 0.0
      %462 = vmatpush.msra.mxu0 0.0
      %463 = vmatpush.msra.mxu0 0.0
      %464 = vmatpush.msra.mxu0 0.0
      %465 = vmatpush.msra.mxu0 0.0
      %466 = vmatpush.msra.mxu0 0.0
      %467 = vmatpush.msra.mxu0 0.0
      %468 = vmatpush.msra.mxu0 0.0
      %469 = vmatpush.msra.mxu0 0.0
      %470 = vmatpush.msra.mxu0 0.0
      %471 = vmatpush.msra.mxu0 %v426
      %472 = vmatpush.msra.mxu0 %v425
      %473 = vmatpush.msra.mxu0 %v424
      %474 = vmatpush.msra.mxu0 %v423
      %475 = vmatmul.f32.gmra.mxu0 %v457
      %v476 = vpop.f32.mrf.mxu0
      %v477 = vadd.f32 %v447, %v476
      %478 = vdwg.mxu0
      %479 = vmatpush.msra.mxu0 0.0
      %480 = vmatpush.msra.mxu0 0.0
      %481 = vmatpush.msra.mxu0 0.0
      %482 = vmatpush.msra.mxu0 0.0
      %483 = vmatpush.msra.mxu0 0.0
      %484 = vmatpush.msra.mxu0 0.0
      %485 = vmatpush.msra.mxu0 0.0
      %486 = vmatpush.msra.mxu0 0.0
      %487 = vmatpush.msra.mxu0 0.0
      %488 = vmatpush.msra.mxu0 0.0
      %489 = vmatpush.msra.mxu0 0.0
      %490 = vmatpush.msra.mxu0 0.0
      %491 = vmatpush.msra.mxu0 %v430
      %492 = vmatpush.msra.mxu0 %v429
      %493 = vmatpush.msra.mxu0 %v428
      %494 = vmatpush.msra.mxu0 %v427
      %495 = vmatmul.f32.gmra.mxu0 %v457
      %v496 = vpop.f32.mrf.mxu0
      %v497 = vadd.f32 %v448, %v496
      %498 = vdwg.mxu0
      %499 = vmatpush.msra.mxu0 0.0
      %500 = vmatpush.msra.mxu0 0.0
      %501 = vmatpush.msra.mxu0 0.0
      %502 = vmatpush.msra.mxu0 0.0
      %503 = vmatpush.msra.mxu0 0.0
      %504 = vmatpush.msra.mxu0 0.0
      %505 = vmatpush.msra.mxu0 0.0
      %506 = vmatpush.msra.mxu0 0.0
      %507 = vmatpush.msra.mxu0 0.0
      %508 = vmatpush.msra.mxu0 0.0
      %509 = vmatpush.msra.mxu0 0.0
      %510 = vmatpush.msra.mxu0 0.0
      %511 = vmatpush.msra.mxu0 %v434
      %512 = vmatpush.msra.mxu0 %v433
      %513 = vmatpush.msra.mxu0 %v432
      %514 = vmatpush.msra.mxu0 %v431
      %515 = vmatmul.f32.gmra.mxu0 %v457
      %v516 = vpop.f32.mrf.mxu0
      %v517 = vadd.f32 %v449, %v516
      %518 = vdwg.mxu0
      %519 = vmatpush.msra.mxu0 0.0
      %520 = vmatpush.msra.mxu0 0.0
      %521 = vmatpush.msra.mxu0 0.0
      %522 = vmatpush.msra.mxu0 0.0
      %523 = vmatpush.msra.mxu0 0.0
      %524 = vmatpush.msra.mxu0 0.0
      %525 = vmatpush.msra.mxu0 0.0
      %526 = vmatpush.msra.mxu0 0.0
      %527 = vmatpush.msra.mxu0 0.0
      %528 = vmatpush.msra.mxu0 0.0
      %529 = vmatpush.msra.mxu0 0.0
      %530 = vmatpush.msra.mxu0 0.0
      %531 = vmatpush.msra.mxu0 %v438
      %532 = vmatpush.msra.mxu0 %v437
      %533 = vmatpush.msra.mxu0 %v436
      %534 = vmatpush.msra.mxu0 %v435
      %535 = vmatmul.f32.gmra.mxu0 %v457
      %v536 = vpop.f32.mrf.mxu0
      %v537 = vadd.f32 %v450, %v536
      %538 = vdwg.mxu0
      %v539 = vld [vmem:[%s2] sm:$0xff]
      %v540 = vld [vmem:[%s2 + $0x8] sm:$0xff]
      %v541 = vld [vmem:[%s2 + $0x10] sm:$0xff]
      %v542 = vld [vmem:[%s2 + $0x18] sm:$0xff]
      %v543 = vld [vmem:[%s2 + $0x20] sm:$0xff]
      %v544 = vld [vmem:[%s2 + $0x28] sm:$0xff]
      %v545 = vld [vmem:[%s2 + $0x30] sm:$0xff]
      %v546 = vld [vmem:[%s2 + $0x38] sm:$0xff]
      %v547 = vld [vmem:[%s2 + $0x40] sm:$0xff]
      %v548 = vld [vmem:[%s2 + $0x48] sm:$0xff]
      %v549 = vld [vmem:[%s2 + $0x50] sm:$0xff]
      %v550 = vld [vmem:[%s2 + $0x58] sm:$0xff]
      %v551 = vld [vmem:[%s2 + $0x60] sm:$0xff]
      %v552 = vld [vmem:[%s2 + $0x68] sm:$0xff]
      %v553 = vld [vmem:[%s2 + $0x70] sm:$0xff]
      %v554 = vld [vmem:[%s2 + $0x78] sm:$0xff]
      %v555 = vld [vmem:[%s5] sm:$0x1]
      %v556 = vld [vmem:[%s5 + $0x1] sm:$0x1]
      %v557 = vld [vmem:[%s5 + $0x2] sm:$0x1]
      %v558 = vld [vmem:[%s5 + $0x3] sm:$0x1]
      %v563 = vperm.slane %v555, 0
      %v564 = vperm.slane %v556, 0
      %v565 = vperm.slane %v557, 0
      %v566 = vperm.slane %v558, 0
      %571 = vmatpush.msra.mxu0 0.0
      %572 = vmatpush.msra.mxu0 0.0
      %573 = vmatpush.msra.mxu0 0.0
      %574 = vmatpush.msra.mxu0 0.0
      %575 = vmatpush.msra.mxu0 0.0
      %576 = vmatpush.msra.mxu0 0.0
      %577 = vmatpush.msra.mxu0 0.0
      %578 = vmatpush.msra.mxu0 0.0
      %579 = vmatpush.msra.mxu0 0.0
      %580 = vmatpush.msra.mxu0 0.0
      %581 = vmatpush.msra.mxu0 0.0
      %582 = vmatpush.msra.mxu0 0.0
      %583 = vmatpush.msra.mxu0 %v542
      %584 = vmatpush.msra.mxu0 %v541
      %585 = vmatpush.msra.mxu0 %v540
      %586 = vmatpush.msra.mxu0 %v539
      %587 = vmatmul.f32.gmra.mxu0 %v457
      %v588 = vpop.f32.mrf.mxu0
      %v589 = vadd.f32 %v563, %v588
      %590 = vdwg.mxu0
      %591 = vmatpush.msra.mxu0 0.0
      %592 = vmatpush.msra.mxu0 0.0
      %593 = vmatpush.msra.mxu0 0.0
      %594 = vmatpush.msra.mxu0 0.0
      %595 = vmatpush.msra.mxu0 0.0
      %596 = vmatpush.msra.mxu0 0.0
      %597 = vmatpush.msra.mxu0 0.0
      %598 = vmatpush.msra.mxu0 0.0
      %599 = vmatpush.msra.mxu0 0.0
      %600 = vmatpush.msra.mxu0 0.0
      %601 = vmatpush.msra.mxu0 0.0
      %602 = vmatpush.msra.mxu0 0.0
      %603 = vmatpush.msra.mxu0 %v546
      %604 = vmatpush.msra.mxu0 %v545
      %605 = vmatpush.msra.mxu0 %v544
      %606 = vmatpush.msra.mxu0 %v543
      %607 = vmatmul.f32.gmra.mxu0 %v457
      %v608 = vpop.f32.mrf.mxu0
      %v609 = vadd.f32 %v564, %v608
      %610 = vdwg.mxu0
      %611 = vmatpush.msra.mxu0 0.0
      %612 = vmatpush.msra.mxu0 0.0
      %613 = vmatpush.msra.mxu0 0.0
      %614 = vmatpush.msra.mxu0 0.0
      %615 = vmatpush.msra.mxu0 0.0
      %616 = vmatpush.msra.mxu0 0.0
      %617 = vmatpush.msra.mxu0 0.0
      %618 = vmatpush.msra.mxu0 0.0
      %619 = vmatpush.msra.mxu0 0.0
      %620 = vmatpush.msra.mxu0 0.0
      %621 = vmatpush.msra.mxu0 0.0
      %622 = vmatpush.msra.mxu0 0.0
      %623 = vmatpush.msra.mxu0 %v550
      %624 = vmatpush.msra.mxu0 %v549
      %625 = vmatpush.msra.mxu0 %v548
      %626 = vmatpush.msra.mxu0 %v547
      %627 = vmatmul.f32.gmra.mxu0 %v457
      %v628 = vpop.f32.mrf.mxu0
      %v629 = vadd.f32 %v565, %v628
      %630 = vdwg.mxu0
      %631 = vmatpush.msra.mxu0 0.0
      %632 = vmatpush.msra.mxu0 0.0
      %633 = vmatpush.msra.mxu0 0.0
      %634 = vmatpush.msra.mxu0 0.0
      %635 = vmatpush.msra.mxu0 0.0
      %636 = vmatpush.msra.mxu0 0.0
      %637 = vmatpush.msra.mxu0 0.0
      %638 = vmatpush.msra.mxu0 0.0
      %639 = vmatpush.msra.mxu0 0.0
      %640 = vmatpush.msra.mxu0 0.0
      %641 = vmatpush.msra.mxu0 0.0
      %642 = vmatpush.msra.mxu0 0.0
      %643 = vmatpush.msra.mxu0 %v554
      %644 = vmatpush.msra.mxu0 %v553
      %645 = vmatpush.msra.mxu0 %v552
      %646 = vmatpush.msra.mxu0 %v551
      %647 = vmatmul.f32.gmra.mxu0 %v457
      %v648 = vpop.f32.mrf.mxu0
      %v649 = vadd.f32 %v566, %v648
      %650 = vdwg.mxu0
      %v651 = vld [vmem:[%s3] sm:$0xff]
      %v652 = vld [vmem:[%s3 + $0x8] sm:$0xff]
      %v653 = vld [vmem:[%s3 + $0x10] sm:$0xff]
      %v654 = vld [vmem:[%s3 + $0x18] sm:$0xff]
      %v655 = vld [vmem:[%s3 + $0x20] sm:$0xff]
      %v656 = vld [vmem:[%s3 + $0x28] sm:$0xff]
      %v657 = vld [vmem:[%s3 + $0x30] sm:$0xff]
      %v658 = vld [vmem:[%s3 + $0x38] sm:$0xff]
      %v659 = vld [vmem:[%s3 + $0x40] sm:$0xff]
      %v660 = vld [vmem:[%s3 + $0x48] sm:$0xff]
      %v661 = vld [vmem:[%s3 + $0x50] sm:$0xff]
      %v662 = vld [vmem:[%s3 + $0x58] sm:$0xff]
      %v663 = vld [vmem:[%s3 + $0x60] sm:$0xff]
      %v664 = vld [vmem:[%s3 + $0x68] sm:$0xff]
      %v665 = vld [vmem:[%s3 + $0x70] sm:$0xff]
      %v666 = vld [vmem:[%s3 + $0x78] sm:$0xff]
      %v667 = vld [vmem:[%s6] sm:$0x1]
      %v668 = vld [vmem:[%s6 + $0x1] sm:$0x1]
      %v669 = vld [vmem:[%s6 + $0x2] sm:$0x1]
      %v670 = vld [vmem:[%s6 + $0x3] sm:$0x1]
      %v675 = vperm.slane %v667, 0
      %v676 = vperm.slane %v668, 0
      %v677 = vperm.slane %v669, 0
      %v678 = vperm.slane %v670, 0
      %683 = vmatpush.msra.mxu0 0.0
      %684 = vmatpush.msra.mxu0 0.0
      %685 = vmatpush.msra.mxu0 0.0
      %686 = vmatpush.msra.mxu0 0.0
      %687 = vmatpush.msra.mxu0 0.0
      %688 = vmatpush.msra.mxu0 0.0
      %689 = vmatpush.msra.mxu0 0.0
      %690 = vmatpush.msra.mxu0 0.0
      %691 = vmatpush.msra.mxu0 0.0
      %692 = vmatpush.msra.mxu0 0.0
      %693 = vmatpush.msra.mxu0 0.0
      %694 = vmatpush.msra.mxu0 0.0
      %695 = vmatpush.msra.mxu0 %v654
      %696 = vmatpush.msra.mxu0 %v653
      %697 = vmatpush.msra.mxu0 %v652
      %698 = vmatpush.msra.mxu0 %v651
      %699 = vmatmul.f32.gmra.mxu0 %v457
      %v700 = vpop.f32.mrf.mxu0
      %v701 = vadd.f32 %v675, %v700
      %702 = vdwg.mxu0
      %703 = vmatpush.msra.mxu0 0.0
      %704 = vmatpush.msra.mxu0 0.0
      %705 = vmatpush.msra.mxu0 0.0
      %706 = vmatpush.msra.mxu0 0.0
      %707 = vmatpush.msra.mxu0 0.0
      %708 = vmatpush.msra.mxu0 0.0
      %709 = vmatpush.msra.mxu0 0.0
      %710 = vmatpush.msra.mxu0 0.0
      %711 = vmatpush.msra.mxu0 0.0
      %712 = vmatpush.msra.mxu0 0.0
      %713 = vmatpush.msra.mxu0 0.0
      %714 = vmatpush.msra.mxu0 0.0
      %715 = vmatpush.msra.mxu0 %v658
      %716 = vmatpush.msra.mxu0 %v657
      %717 = vmatpush.msra.mxu0 %v656
      %718 = vmatpush.msra.mxu0 %v655
      %719 = vmatmul.f32.gmra.mxu0 %v457
      %v720 = vpop.f32.mrf.mxu0
      %v721 = vadd.f32 %v676, %v720
      %722 = vdwg.mxu0
      %723 = vmatpush.msra.mxu0 0.0
      %724 = vmatpush.msra.mxu0 0.0
      %725 = vmatpush.msra.mxu0 0.0
      %726 = vmatpush.msra.mxu0 0.0
      %727 = vmatpush.msra.mxu0 0.0
      %728 = vmatpush.msra.mxu0 0.0
      %729 = vmatpush.msra.mxu0 0.0
      %730 = vmatpush.msra.mxu0 0.0
      %731 = vmatpush.msra.mxu0 0.0
      %732 = vmatpush.msra.mxu0 0.0
      %733 = vmatpush.msra.mxu0 0.0
      %734 = vmatpush.msra.mxu0 0.0
      %735 = vmatpush.msra.mxu0 %v662
      %736 = vmatpush.msra.mxu0 %v661
      %737 = vmatpush.msra.mxu0 %v660
      %738 = vmatpush.msra.mxu0 %v659
      %739 = vmatmul.f32.gmra.mxu0 %v457
      %v740 = vpop.f32.mrf.mxu0
      %v741 = vadd.f32 %v677, %v740
      %742 = vdwg.mxu0
      %743 = vmatpush.msra.mxu0 0.0
      %744 = vmatpush.msra.mxu0 0.0
      %745 = vmatpush.msra.mxu0 0.0
      %746 = vmatpush.msra.mxu0 0.0
      %747 = vmatpush.msra.mxu0 0.0
      %748 = vmatpush.msra.mxu0 0.0
      %749 = vmatpush.msra.mxu0 0.0
      %750 = vmatpush.msra.mxu0 0.0
      %751 = vmatpush.msra.mxu0 0.0
      %752 = vmatpush.msra.mxu0 0.0
      %753 = vmatpush.msra.mxu0 0.0
      %754 = vmatpush.msra.mxu0 0.0
      %755 = vmatpush.msra.mxu0 %v666
      %756 = vmatpush.msra.mxu0 %v665
      %757 = vmatpush.msra.mxu0 %v664
      %758 = vmatpush.msra.mxu0 %v663
      %759 = vmatmul.f32.gmra.mxu0 %v457
      %v760 = vpop.f32.mrf.mxu0
      %v761 = vadd.f32 %v678, %v760
      %762 = vdwg.mxu0
      %v763 = vmul.f32 %v477, 0.35355338
      %v764 = vmul.f32 %v497, 0.35355338
      %v765 = vmul.f32 %v517, 0.35355338
      %v766 = vmul.f32 %v537, 0.35355338
      %v767 = vld [vmem:[%s412] sm:$0xff]
      %v768 = vld [vmem:[%s412 + $0x8] sm:$0xff]
      %v769 = vld [vmem:[%s412 + $0x10] sm:$0xff]
      %v770 = vld [vmem:[%s412 + $0x18] sm:$0xff]
      %vm771 = vcmask 64512
      %v773 = vsel %vm771, %v763, 0
      %v776 = vsel %vm771, %v589, 0
      %778 = vmatpush.xpose.msra.mxu0 0.0
      %779 = vmatpush.xpose.msra.mxu0 0.0
      %780 = vmatpush.xpose.msra.mxu0 0.0
      %781 = vmatpush.xpose.msra.mxu0 0.0
      %782 = vmatpush.xpose.msra.mxu0 0.0
      %783 = vmatpush.xpose.msra.mxu0 0.0
      %784 = vmatpush.xpose.msra.mxu0 0.0
      %785 = vmatpush.xpose.msra.mxu0 0.0
      %786 = vmatpush.xpose.msra.mxu0 0.0
      %787 = vmatpush.xpose.msra.mxu0 0.0
      %788 = vmatpush.xpose.msra.mxu0 0.0
      %789 = vmatpush.xpose.msra.mxu0 0.0
      %790 = vmatpush.xpose.msra.mxu0 0.0
      %791 = vmatpush.xpose.msra.mxu0 0.0
      %792 = vmatpush.xpose.msra.mxu0 0.0
      %793 = vmatpush.xpose.msra.mxu0 %v776
      %794 = vmatmul.f32.gmra.mxu0 %v773
      %v795 = vpop.f32.mrf.mxu0
      %v796 = vadd.f32 %v767, %v795
      %797 = vdwg.mxu0
      %v799 = vsel %vm771, %v764, 0
      %v802 = vsel %vm771, %v609, 0
      %804 = vmatpush.xpose.msra.mxu0 0.0
      %805 = vmatpush.xpose.msra.mxu0 0.0
      %806 = vmatpush.xpose.msra.mxu0 0.0
      %807 = vmatpush.xpose.msra.mxu0 0.0
      %808 = vmatpush.xpose.msra.mxu0 0.0
      %809 = vmatpush.xpose.msra.mxu0 0.0
      %810 = vmatpush.xpose.msra.mxu0 0.0
      %811 = vmatpush.xpose.msra.mxu0 0.0
      %812 = vmatpush.xpose.msra.mxu0 0.0
      %813 = vmatpush.xpose.msra.mxu0 0.0
      %814 = vmatpush.xpose.msra.mxu0 0.0
      %815 = vmatpush.xpose.msra.mxu0 0.0
      %816 = vmatpush.xpose.msra.mxu0 0.0
      %817 = vmatpush.xpose.msra.mxu0 0.0
      %818 = vmatpush.xpose.msra.mxu0 0.0
      %819 = vmatpush.xpose.msra.mxu0 %v802
      %820 = vmatmul.f32.gmra.mxu0 %v799
      %v821 = vpop.f32.mrf.mxu0
      %v822 = vadd.f32 %v768, %v821
      %823 = vdwg.mxu0
      %v825 = vsel %vm771, %v765, 0
      %v828 = vsel %vm771, %v629, 0
      %830 = vmatpush.xpose.msra.mxu0 0.0
      %831 = vmatpush.xpose.msra.mxu0 0.0
      %832 = vmatpush.xpose.msra.mxu0 0.0
      %833 = vmatpush.xpose.msra.mxu0 0.0
      %834 = vmatpush.xpose.msra.mxu0 0.0
      %835 = vmatpush.xpose.msra.mxu0 0.0
      %836 = vmatpush.xpose.msra.mxu0 0.0
      %837 = vmatpush.xpose.msra.mxu0 0.0
      %838 = vmatpush.xpose.msra.mxu0 0.0
      %839 = vmatpush.xpose.msra.mxu0 0.0
      %840 = vmatpush.xpose.msra.mxu0 0.0
      %841 = vmatpush.xpose.msra.mxu0 0.0
      %842 = vmatpush.xpose.msra.mxu0 0.0
      %843 = vmatpush.xpose.msra.mxu0 0.0
      %844 = vmatpush.xpose.msra.mxu0 0.0
      %845 = vmatpush.xpose.msra.mxu0 %v828
      %846 = vmatmul.f32.gmra.mxu0 %v825
      %v847 = vpop.f32.mrf.mxu0
      %v848 = vadd.f32 %v769, %v847
      %849 = vdwg.mxu0
      %v851 = vsel %vm771, %v766, 0
      %v854 = vsel %vm771, %v649, 0
      %856 = vmatpush.xpose.msra.mxu0 0.0
      %857 = vmatpush.xpose.msra.mxu0 0.0
      %858 = vmatpush.xpose.msra.mxu0 0.0
      %859 = vmatpush.xpose.msra.mxu0 0.0
      %860 = vmatpush.xpose.msra.mxu0 0.0
      %861 = vmatpush.xpose.msra.mxu0 0.0
      %862 = vmatpush.xpose.msra.mxu0 0.0
      %863 = vmatpush.xpose.msra.mxu0 0.0
      %864 = vmatpush.xpose.msra.mxu0 0.0
      %865 = vmatpush.xpose.msra.mxu0 0.0
      %866 = vmatpush.xpose.msra.mxu0 0.0
      %867 = vmatpush.xpose.msra.mxu0 0.0
      %868 = vmatpush.xpose.msra.mxu0 0.0
      %869 = vmatpush.xpose.msra.mxu0 0.0
      %870 = vmatpush.xpose.msra.mxu0 0.0
      %871 = vmatpush.xpose.msra.mxu0 %v854
      %872 = vmatmul.f32.gmra.mxu0 %v851
      %v873 = vpop.f32.mrf.mxu0
      %v874 = vadd.f32 %v770, %v873
      %875 = vdwg.mxu0
      %v876 = vsel %vm771, %v796, -inf
      %877 = vmax.xlane.f32.xlu0 %v876
      %v878 = vpop.xlane.xlu0 %877
      %v879 = vsel %vm771, %v822, -inf
      %880 = vmax.xlane.f32.xlu0 %v879
      %v881 = vpop.xlane.xlu0 %880
      %v882 = vsel %vm771, %v848, -inf
      %883 = vmax.xlane.f32.xlu0 %v882
      %v884 = vpop.xlane.xlu0 %883
      %v885 = vsel %vm771, %v874, -inf
      %886 = vmax.xlane.f32.xlu0 %v885
      %v887 = vpop.xlane.xlu0 %886
      %v888 = vsub.f32 %v796, %v878
      %v889 = vsub.f32 %v822, %v881
      %v890 = vsub.f32 %v848, %v884
      %v891 = vsub.f32 %v874, %v887
      %v892 = vmul.f32 %v888, 1.442695
      %v893 = vpow.pop %v892
      %v894 = vmul.f32 %v889, 1.442695
      %v895 = vpow.pop %v894
      %v896 = vmul.f32 %v890, 1.442695
      %v897 = vpow.pop %v896
      %v898 = vmul.f32 %v891, 1.442695
      %v899 = vpow.pop %v898
      %v900 = vsub.f32 0.0, %v878
      %v901 = vsub.f32 0.0, %v881
      %v902 = vsub.f32 0.0, %v884
      %v903 = vsub.f32 0.0, %v887
      %v904 = vmul.f32 %v900, 1.442695
      %v905 = vpow.pop %v904
      %v906 = vmul.f32 %v901, 1.442695
      %v907 = vpow.pop %v906
      %v908 = vmul.f32 %v902, 1.442695
      %v909 = vpow.pop %v908
      %v910 = vmul.f32 %v903, 1.442695
      %v911 = vpow.pop %v910
      %v912 = vsel %vm771, %v893, 0.0
      %913 = vadd.xlane.f32.xlu0 %v912
      %v914 = vpop.xlane.xlu0 %913
      %v915 = vsel %vm771, %v895, 0.0
      %916 = vadd.xlane.f32.xlu0 %v915
      %v917 = vpop.xlane.xlu0 %916
      %v918 = vsel %vm771, %v897, 0.0
      %919 = vadd.xlane.f32.xlu0 %v918
      %v920 = vpop.xlane.xlu0 %919
      %v921 = vsel %vm771, %v899, 0.0
      %922 = vadd.xlane.f32.xlu0 %v921
      %v923 = vpop.xlane.xlu0 %922
      %v924 = vadd.f32 %v905, %v914
      %v925 = vadd.f32 %v907, %v917
      %v926 = vadd.f32 %v909, %v920
      %v927 = vadd.f32 %v911, %v923
      %v928 = vrcp.pop %v924
      %v929 = vrcp.pop %v925
      %v930 = vrcp.pop %v926
      %v931 = vrcp.pop %v927
      %v932 = vmul.f32 %v893, %v928
      %v933 = vmul.f32 %v895, %v929
      %v934 = vmul.f32 %v897, %v930
      %v935 = vmul.f32 %v899, %v931
      %v936 = vld [vmem:[%s417] sm:$0xff]
      %v937 = vld [vmem:[%s417 + $0x8] sm:$0xff]
      %v938 = vld [vmem:[%s417 + $0x10] sm:$0xff]
      %v939 = vld [vmem:[%s417 + $0x18] sm:$0xff]
      %v940 = vmul.f32 %v932, %v936
      %v941 = vmul.f32 %v933, %v937
      %v942 = vmul.f32 %v934, %v938
      %v943 = vmul.f32 %v935, %v939
      %v945 = vsel %vm771, %v940, 0
      %947 = vmatpush.msra.mxu0 0.0
      %948 = vmatpush.msra.mxu0 0.0
      %949 = vmatpush.msra.mxu0 0.0
      %950 = vmatpush.msra.mxu0 0.0
      %951 = vmatpush.msra.mxu0 0.0
      %952 = vmatpush.msra.mxu0 0.0
      %953 = vmatpush.msra.mxu0 0.0
      %954 = vmatpush.msra.mxu0 0.0
      %955 = vmatpush.msra.mxu0 0.0
      %956 = vmatpush.msra.mxu0 0.0
      %957 = vmatpush.msra.mxu0 0.0
      %958 = vmatpush.msra.mxu0 0.0
      %959 = vmatpush.msra.mxu0 0.0
      %960 = vmatpush.msra.mxu0 0.0
      %961 = vmatpush.msra.mxu0 0.0
      %962 = vmatpush.msra.mxu0 %v701
      %963 = vmatmul.f32.gmra.mxu0 %v945
      %v964 = vpop.f32.mrf.mxu0
      %v965 = vadd.f32 0.0, %v964
      %966 = vdwg.mxu0
      %v968 = vsel %vm771, %v941, 0
      %970 = vmatpush.msra.mxu0 0.0
      %971 = vmatpush.msra.mxu0 0.0
      %972 = vmatpush.msra.mxu0 0.0
      %973 = vmatpush.msra.mxu0 0.0
      %974 = vmatpush.msra.mxu0 0.0
      %975 = vmatpush.msra.mxu0 0.0
      %976 = vmatpush.msra.mxu0 0.0
      %977 = vmatpush.msra.mxu0 0.0
      %978 = vmatpush.msra.mxu0 0.0
      %979 = vmatpush.msra.mxu0 0.0
      %980 = vmatpush.msra.mxu0 0.0
      %981 = vmatpush.msra.mxu0 0.0
      %982 = vmatpush.msra.mxu0 0.0
      %983 = vmatpush.msra.mxu0 0.0
      %984 = vmatpush.msra.mxu0 0.0
      %985 = vmatpush.msra.mxu0 %v721
      %986 = vmatmul.f32.gmra.mxu0 %v968
      %v987 = vpop.f32.mrf.mxu0
      %v988 = vadd.f32 0.0, %v987
      %989 = vdwg.mxu0
      %v991 = vsel %vm771, %v942, 0
      %993 = vmatpush.msra.mxu0 0.0
      %994 = vmatpush.msra.mxu0 0.0
      %995 = vmatpush.msra.mxu0 0.0
      %996 = vmatpush.msra.mxu0 0.0
      %997 = vmatpush.msra.mxu0 0.0
      %998 = vmatpush.msra.mxu0 0.0
      %999 = vmatpush.msra.mxu0 0.0
      %1000 = vmatpush.msra.mxu0 0.0
      %1001 = vmatpush.msra.mxu0 0.0
      %1002 = vmatpush.msra.mxu0 0.0
      %1003 = vmatpush.msra.mxu0 0.0
      %1004 = vmatpush.msra.mxu0 0.0
      %1005 = vmatpush.msra.mxu0 0.0
      %1006 = vmatpush.msra.mxu0 0.0
      %1007 = vmatpush.msra.mxu0 0.0
      %1008 = vmatpush.msra.mxu0 %v741
      %1009 = vmatmul.f32.gmra.mxu0 %v991
      %v1010 = vpop.f32.mrf.mxu0
      %v1011 = vadd.f32 0.0, %v1010
      %1012 = vdwg.mxu0
      %v1014 = vsel %vm771, %v943, 0
      %1016 = vmatpush.msra.mxu0 0.0
      %1017 = vmatpush.msra.mxu0 0.0
      %1018 = vmatpush.msra.mxu0 0.0
      %1019 = vmatpush.msra.mxu0 0.0
      %1020 = vmatpush.msra.mxu0 0.0
      %1021 = vmatpush.msra.mxu0 0.0
      %1022 = vmatpush.msra.mxu0 0.0
      %1023 = vmatpush.msra.mxu0 0.0
      %1024 = vmatpush.msra.mxu0 0.0
      %1025 = vmatpush.msra.mxu0 0.0
      %1026 = vmatpush.msra.mxu0 0.0
      %1027 = vmatpush.msra.mxu0 0.0
      %1028 = vmatpush.msra.mxu0 0.0
      %1029 = vmatpush.msra.mxu0 0.0
      %1030 = vmatpush.msra.mxu0 0.0
      %1031 = vmatpush.msra.mxu0 %v761
      %1032 = vmatmul.f32.gmra.mxu0 %v1014
      %v1033 = vpop.f32.mrf.mxu0
      %v1034 = vadd.f32 0.0, %v1033
      %1035 = vdwg.mxu0
      %v1036 = vld [vmem:[%s7] sm:$0xff]
      %v1037 = vld [vmem:[%s7 + $0x8] sm:$0xff]
      %v1038 = vld [vmem:[%s7 + $0x10] sm:$0xff]
      %v1039 = vld [vmem:[%s7 + $0x18] sm:$0xff]
      %v1041 = vsel %vm771, %v965, 0
      %1043 = vmatpush.msra.mxu0 0.0
      %1044 = vmatpush.msra.mxu0 0.0
      %1045 = vmatpush.msra.mxu0 0.0
      %1046 = vmatpush.msra.mxu0 0.0
      %1047 = vmatpush.msra.mxu0 0.0
      %1048 = vmatpush.msra.mxu0 0.0
      %1049 = vmatpush.msra.mxu0 0.0
      %1050 = vmatpush.msra.mxu0 0.0
      %1051 = vmatpush.msra.mxu0 0.0
      %1052 = vmatpush.msra.mxu0 0.0
      %1053 = vmatpush.msra.mxu0 0.0
      %1054 = vmatpush.msra.mxu0 0.0
      %1055 = vmatpush.msra.mxu0 0.0
      %1056 = vmatpush.msra.mxu0 0.0
      %1057 = vmatpush.msra.mxu0 0.0
      %1058 = vmatpush.msra.mxu0 %v1036
      %1059 = vmatmul.f32.gmra.mxu0 %v1041
      %v1060 = vpop.f32.mrf.mxu0
      %v1061 = vadd.f32 0.0, %v1060
      %1062 = vdwg.mxu0
      %v1064 = vsel %vm771, %v988, 0
      %1066 = vmatpush.msra.mxu0 0.0
      %1067 = vmatpush.msra.mxu0 0.0
      %1068 = vmatpush.msra.mxu0 0.0
      %1069 = vmatpush.msra.mxu0 0.0
      %1070 = vmatpush.msra.mxu0 0.0
      %1071 = vmatpush.msra.mxu0 0.0
      %1072 = vmatpush.msra.mxu0 0.0
      %1073 = vmatpush.msra.mxu0 0.0
      %1074 = vmatpush.msra.mxu0 0.0
      %1075 = vmatpush.msra.mxu0 0.0
      %1076 = vmatpush.msra.mxu0 0.0
      %1077 = vmatpush.msra.mxu0 0.0
      %1078 = vmatpush.msra.mxu0 0.0
      %1079 = vmatpush.msra.mxu0 0.0
      %1080 = vmatpush.msra.mxu0 0.0
      %1081 = vmatpush.msra.mxu0 %v1037
      %1082 = vmatmul.f32.gmra.mxu0 %v1064
      %v1083 = vpop.f32.mrf.mxu0
      %v1084 = vadd.f32 0.0, %v1083
      %1085 = vdwg.mxu0
      %v1087 = vsel %vm771, %v1011, 0
      %1089 = vmatpush.msra.mxu0 0.0
      %1090 = vmatpush.msra.mxu0 0.0
      %1091 = vmatpush.msra.mxu0 0.0
      %1092 = vmatpush.msra.mxu0 0.0
      %1093 = vmatpush.msra.mxu0 0.0
      %1094 = vmatpush.msra.mxu0 0.0
      %1095 = vmatpush.msra.mxu0 0.0
      %1096 = vmatpush.msra.mxu0 0.0
      %1097 = vmatpush.msra.mxu0 0.0
      %1098 = vmatpush.msra.mxu0 0.0
      %1099 = vmatpush.msra.mxu0 0.0
      %1100 = vmatpush.msra.mxu0 0.0
      %1101 = vmatpush.msra.mxu0 0.0
      %1102 = vmatpush.msra.mxu0 0.0
      %1103 = vmatpush.msra.mxu0 0.0
      %1104 = vmatpush.msra.mxu0 %v1038
      %1105 = vmatmul.f32.gmra.mxu0 %v1087
      %v1106 = vpop.f32.mrf.mxu0
      %v1107 = vadd.f32 0.0, %v1106
      %1108 = vdwg.mxu0
      %v1110 = vsel %vm771, %v1034, 0
      %1112 = vmatpush.msra.mxu0 0.0
      %1113 = vmatpush.msra.mxu0 0.0
      %1114 = vmatpush.msra.mxu0 0.0
      %1115 = vmatpush.msra.mxu0 0.0
      %1116 = vmatpush.msra.mxu0 0.0
      %1117 = vmatpush.msra.mxu0 0.0
      %1118 = vmatpush.msra.mxu0 0.0
      %1119 = vmatpush.msra.mxu0 0.0
      %1120 = vmatpush.msra.mxu0 0.0
      %1121 = vmatpush.msra.mxu0 0.0
      %1122 = vmatpush.msra.mxu0 0.0
      %1123 = vmatpush.msra.mxu0 0.0
      %1124 = vmatpush.msra.mxu0 0.0
      %1125 = vmatpush.msra.mxu0 0.0
      %1126 = vmatpush.msra.mxu0 0.0
      %1127 = vmatpush.msra.mxu0 %v1039
      %1128 = vmatmul.f32.gmra.mxu0 %v1110
      %v1129 = vpop.f32.mrf.mxu0
      %v1130 = vadd.f32 0.0, %v1129
      %1131 = vdwg.mxu0
      %v1132 = vadd.f32 %v1061, %v1084
      %v1133 = vadd.f32 %v1132, %v1107
      %v1134 = vadd.f32 %v1133, %v1130
      %v1135 = vld [vmem:[%s8] sm:$0x1]
      %v1137 = vperm.slane %v1135, 0
      %v1139 = vadd.f32 %v1134, %v1137
      %1140 = vst [vmem:[%s421] sm:$0xff] %v1139
      %p1141 = scmp.lt.s32.totalorder %s22, 1
      %s1142 = scalar_select %p1141, %s22, 1
      %s1143 = smul.addr %s1142, 8
      %s1144 = scalar_lea.vmem %s11, %s1143
      // Predicated region
      $region65: #{gd_multihead_attention.1} parent=63 // pred_check
        %p1145 = pneg %p286
      $region66: #{gd_multihead_attention.1} parent=63 // pred_check_branch
        %1147 = sbr.rel (%p1145) target = $region68
      $region67: #{gd_multihead_attention.1} parent=63 // pred_region
        _
      $region68: #{gd_multihead_attention.1} parent=63 // pred_fallthru
        _
    $region64: #{gd_multihead_attention.1} parent=5 // pred_fallthru
      _
    %p1148 = scmp.le.s32.totalorder 2, %s17
    // Predicated region
    $region69: #{gd_multihead_attention.1} parent=5 // pred_check
      %p1149 = pneg %p1148
    $region70: #{gd_multihead_attention.1} parent=5 // pred_check_branch
      %1151 = sbr.rel (%p1149) target = $region72
    $region71: #{gd_multihead_attention.1} parent=5 // pred_region
      %s1152 = ssub.s32 %s17, 2
      // Predicated region
      $region73: #{gd_multihead_attention.1} parent=71 // pred_check
        %p1153 = pneg %p292
      $region74: #{gd_multihead_attention.1} parent=71 // pred_check_branch
        %1155 = sbr.rel (%p1153) target = $region76
      $region75: #{gd_multihead_attention.1} parent=71 // pred_region
        %p1156 = scmp.lt.s32.totalorder %s23, 1
        %s1157 = scalar_select %p1156, %s23, 1
        %s1158 = smul.addr %s1157, 8
        %s1159 = scalar_lea.vmem %s11, %s1158
      $region76: #{gd_multihead_attention.1} parent=71 // pred_fallthru
        _
    $region72: #{gd_multihead_attention.1} parent=5 // pred_fallthru
      _
  $region6: #{gd_multihead_attention.1} parent=0 // loop_footer
    %s21 = sadd.s32 1, %s17
  $region7: #{gd_multihead_attention.1} parent=0 // loop_footer_branch
    %16 = sbr.rel target = $region3
  $region8: #{gd_multihead_attention.1} parent=0 // loop_exit
    _

</llo_original>
